<compile_context>
chip_gen: v6e
topology: v6e:2x2x1
jax: 0.10.0
libtpu: 0.0.40
codegen_flags: <defaults>
</compile_context>

<pallas_src>
import math

import jax
import jax.numpy as jnp
import numpy as np
from jax.experimental import pallas as pl
from jax.experimental.pallas import tpu as pltpu

_LANES = 128
_SUBLANES = 8


def _round_up(x, m):
    return ((x + m - 1) // m) * m


def _round_down(x, m):
    return (x // m) * m


def _make_linear1_kernel(precision):
    def kernel(x_ref, w_ref, b_ref, o_ref, acc_ref):
        """One (row-tile, K-tile) step of the transposed GEMV.

        x_ref:   (TM, TK)    folded input rows, K-slice      (VMEM)
        w_ref:   (F,  TK)    segmented weight rows, K-slice  (VMEM)
        b_ref:   (1,)        bias                            (SMEM)
        o_ref:   (1, F, TM)  lane-dense output slab          (VMEM)
        acc_ref: (F, TM)     f32 accumulator                 (VMEM scratch)
        """
        k = pl.program_id(1)

        @pl.when(k == 0)
        def _():
            acc_ref[...] = jnp.zeros_like(acc_ref)

        # A @ B^T MXU form: contract the feature (lane) axis of both operands;
        # no materialized transpose of the big x tile in VMEM.
        acc_ref[...] += jax.lax.dot_general(
            w_ref[...], x_ref[...],
            dimension_numbers=(((1,), (1,)), ((), ())),
            preferred_element_type=jnp.float32,
            precision=precision,
        )

        @pl.when(k == pl.num_programs(1) - 1)
        def _():
            o_ref[0] = (acc_ref[...] + b_ref[0]).astype(o_ref.dtype)

    return kernel


def how_many_steps_left(x, weight, bias, prev_state=None, *,
                        block_rows=None, block_k=None, precision=None):
    """JAX/Pallas equivalent of HowManyStepsLeft.forward.

    x:      [..., in_size]
    weight: [1, in_size]   (PyTorch nn.Linear layout)
    bias:   [1]
    returns (prediction [..., 1], [])
    """
    in_size = x.shape[-1]
    lead = x.shape[:-1]
    m = math.prod(lead)
    dtype = x.dtype
    itemsize = jnp.dtype(dtype).itemsize

    # ---- generation-aware VMEM budgets --------------------------------------
    vmem_cap = 64 << 20                        # conservative default (v7x / TC)
    try:
        vmem_cap = int(getattr(pltpu.get_tpu_info(), "vmem_capacity_bytes",
                               vmem_cap) or vmem_cap)
    except Exception:
        pass
    if vmem_cap >= (100 << 20):                # v5e / v6e: 128 MiB physical VMEM
        per_buf_target = 16 << 20              # x-tile bytes per pipeline buffer
        vmem_ceiling = 96 << 20
    else:                                      # v7x: 64 MiB per TensorCore
        per_buf_target = 6 << 20
        vmem_ceiling = 48 << 20

    x2d = x.reshape(m, in_size)

    # ---- fold narrow feature rows into the 128-wide lane dimension ----------
    fold = 1
    if 0 < in_size < _LANES and _LANES % in_size == 0:
        fold = _LANES // in_size
    if fold > 1 and m % fold != 0:
        # Zero-pad up to fold-1 rows so the folded [mf, 128] view is a plain
        # contiguous reshape (full-lane contiguous HBM stream); the padded
        # predictions are sliced away below.
        x2d = jnp.pad(x2d, ((0, fold - m % fold), (0, 0)))
    m_pad = x2d.shape[0]
    mf = m_pad // fold
    w_lane = in_size * fold
    xf = x2d.reshape(mf, w_lane)               # contiguous -> free reshape

    w_row = weight.reshape(1, in_size).astype(dtype)
    if fold == 1:
        wseg = w_row
    else:
        # row j carries w in lanes [j*in_size, (j+1)*in_size)
        wseg = jnp.kron(jnp.eye(fold, dtype=dtype), w_row)
    b1 = bias.reshape(1).astype(jnp.float32)

    # ---- K (feature) tiling: only kicks in for very wide in_size ------------
    if block_k is not None:
        tk = max(1, min(int(block_k), w_lane))
        if tk < w_lane:
            tk = max(_LANES, _round_down(tk, _LANES))
    elif _LANES * w_lane * itemsize <= per_buf_target:
        tk = w_lane                            # a full feature row fits easily
    else:
        # keep a >=128-row, ~per_buf_target x tile even for huge in_size
        tk = max(_LANES, _round_down(per_buf_target // (_LANES * itemsize), _LANES))
        tk = min(tk, w_lane)
    nk = pl.cdiv(w_lane, tk)
    k_total = nk * tk
    if k_total != w_lane:
        # Ragged K tiles would feed stale VMEM into the accumulation (unlike
        # ragged row tiles, whose garbage rows are discarded), so zero-pad
        # x and W along the feature axis instead.
        xf = jnp.pad(xf, ((0, 0), (0, k_total - w_lane)))
        wseg = jnp.pad(wseg, ((0, 0), (0, k_total - w_lane)))

    # ---- row tiling: size the streamed x tile by bytes, not rows ------------
    tile_row_bytes = tk * itemsize
    if block_rows is not None:
        tm = max(1, min(int(block_rows), mf))
        if tm < mf:
            tm = max(_SUBLANES, _round_down(tm, _SUBLANES))
    else:
        tm = max(_LANES, _round_down(per_buf_target // tile_row_bytes, _LANES))
        if mf >= 4 * _LANES:
            # keep >= 4 row tiles so v7x's two TensorCores ("parallel" axis)
            # each get >= 2 double-buffered tiles
            tm = min(tm, _round_up(pl.cdiv(mf, 4), _LANES))
        tm = min(tm, mf)
    ntiles = pl.cdiv(mf, tm)                   # ragged last row tile: its rows
                                               # are discarded by the [:m] slice

    vmem_need = (2 * tm * tk + 2 * fold * tk + 2 * fold * tm) * itemsize \
                + fold * tm * 4
    vmem_limit = int(min(max(vmem_need + (4 << 20), 16 << 20), vmem_ceiling))

    out = pl.pallas_call(
        _make_linear1_kernel(precision),
        out_shape=jax.ShapeDtypeStruct((ntiles, fold, tm), dtype),
        grid=(ntiles, nk),
        in_specs=[
            pl.BlockSpec((tm, tk), lambda i, k: (i, k)),
            pl.BlockSpec((fold, tk), lambda i, k: (0, k)),
            pl.BlockSpec(memory_space=pltpu.MemorySpace.SMEM),
        ],
        out_specs=pl.BlockSpec((1, fold, tm), lambda i, k: (i, 0, 0)),
        scratch_shapes=[pltpu.VMEM((fold, tm), jnp.float32)],
        compiler_params=pltpu.CompilerParams(
            dimension_semantics=("parallel", "arbitrary"),
            vmem_limit_bytes=vmem_limit,
        ),
    )(xf, wseg, b1)

    # out[t, j, r] is the prediction for flat input row (t*tm + r)*fold + j.
    flat = jnp.transpose(out, (0, 2, 1)).reshape(ntiles * tm * fold)[:m]
    return flat.reshape(*lead, 1), []


if __name__ == "__main__":
    key = jax.random.PRNGKey(0)

    def init_linear(k, in_size):
        kw, kb = jax.random.split(k)
        bound = 1.0 / math.sqrt(in_size)
        w = jax.random.uniform(kw, (1, in_size), jnp.float32, -bound, bound)
        b = jax.random.uniform(kb, (1,), jnp.float32, -bound, bound)
        return w, b

    def check(x, w, b, **kw):
        pred, state = how_many_steps_left(x, w, b, **kw)
        pred = jax.block_until_ready(pred)
        assert state == []
        assert pred.shape == x.shape[:-1] + (1,)
        ref = (np.asarray(x, np.float64) @ np.asarray(w, np.float64).T
               + np.asarray(b, np.float64))
        # Tolerance covers default MXU precision (bf16-pass accumulation).
        # Pass precision=jax.lax.Precision.HIGHEST for exact-f32 parity.
        np.testing.assert_allclose(np.asarray(pred, np.float64), ref,
                                   rtol=1e-2, atol=1e-2)

    # 1) folded narrow-feature path (fold = 128 // 32 = 4), m % fold == 0.
    k1, k2, key = jax.random.split(key, 3)
    x = jax.random.normal(k1, (2, 8, 32), jnp.float32)
    w, b = init_linear(k2, 32)
    check(x, w, b)

    # 2) folded path with m % fold != 0 (wrapper zero-pads one row).
    k1, k2, key = jax.random.split(key, 3)
    x = jax.random.normal(k1, (3, 5, 32), jnp.float32)
    w, b = init_linear(k2, 32)
    check(x, w, b)

    # 3) general path (fold = 1): multiple row tiles + ragged last tile.
    k1, k2, key = jax.random.split(key, 3)
    x = jax.random.normal(k1, (5, 120, 160), jnp.float32)    # m = 600 rows
    w, b = init_linear(k2, 160)
    check(x, w, b, block_rows=256)                           # tiles: 256/256/88

    # 4) K-tiled contraction (forced small block_k) with ragged K zero-padding.
    k1, k2, key = jax.random.split(key, 3)
    x = jax.random.normal(k1, (4, 16, 320), jnp.float32)     # 320 -> 3 K tiles
    w, b = init_linear(k2, 320)
    check(x, w, b, block_k=128)

    print("KERNEL_OK")
</pallas_src>

<mosaic_0001>
module attributes {stable_mosaic.version = 11 : i64} {
  func.func @kernel(%arg0: i32, %arg1: i32, %arg2: memref<4x128xf32, #tpu.memory_space<vmem>>, %arg3: memref<4x128xf32, #tpu.memory_space<vmem>>, %arg4: memref<1xf32, #tpu.memory_space<smem>>, %arg5: memref<1x4x4xf32, #tpu.memory_space<vmem>>, %arg6: memref<4x4xf32, #tpu.memory_space<vmem>>) attributes {dimension_semantics = [#tpu.dimension_semantics<parallel>, #tpu.dimension_semantics<arbitrary>], iteration_bounds = array<i64: 1, 1>, scalar_prefetch = 0 : i64, scratch_operands = 1 : i64, tpu.core_type = #tpu.core_type<tc>, window_params = [{transform_indices = @transform_0, window_bounds = array<i64: 4, 128>}, {transform_indices = @transform_1, window_bounds = array<i64: 4, 128>}, {transform_indices = @transform_2, window_bounds = array<i64: 1>}, {transform_indices = @transform_3, window_bounds = array<i64: 1, 4, 4>}]} {
    %c0_i32 = arith.constant 0 : i32
    %0 = arith.cmpi eq, %arg1, %c0_i32 : i32
    %1 = arith.extui %0 : i1 to i32
    %c0_i32_0 = arith.constant 0 : i32
    %2 = arith.cmpi ne, %1, %c0_i32_0 : i32
    scf.if %2 {
      %cst_10 = arith.constant 0.000000e+00 : f32
      %12 = vector.broadcast %cst_10 : f32 to vector<4x4xf32>
      %c0_11 = arith.constant 0 : index
      %c0_12 = arith.constant 0 : index
      %13 = vector.load %arg6[%c0_11, %c0_12] : memref<4x4xf32, #tpu.memory_space<vmem>>, vector<4x4xf32>
      tpu.vector_store %arg6[%c0_11, %c0_12], %12 {strides = array<i32>} : memref<4x4xf32, #tpu.memory_space<vmem>>, vector<4x4xf32>,
    } else {
    }
    %c0 = arith.constant 0 : index
    %c0_1 = arith.constant 0 : index
    %3 = vector.load %arg6[%c0, %c0_1] : memref<4x4xf32, #tpu.memory_space<vmem>>, vector<4x4xf32>
    %c0_2 = arith.constant 0 : index
    %c0_3 = arith.constant 0 : index
    %4 = vector.load %arg3[%c0_2, %c0_3] : memref<4x128xf32, #tpu.memory_space<vmem>>, vector<4x128xf32>
    %c0_4 = arith.constant 0 : index
    %c0_5 = arith.constant 0 : index
    %5 = vector.load %arg2[%c0_4, %c0_5] : memref<4x128xf32, #tpu.memory_space<vmem>>, vector<4x128xf32>
    %cst = arith.constant dense<0.000000e+00> : vector<4x4xf32>
    %6 = tpu.matmul %4, %5, %cst {dimension_numbers = #tpu.dot_dimension_numbers<[1], [1], [0], [0], [0, 0, 1, 0], [], []>} : vector<4x128xf32>, vector<4x128xf32>, vector<4x4xf32> -> vector<4x4xf32>
    %7 = arith.addf %3, %6 : vector<4x4xf32>
    %c0_6 = arith.constant 0 : index
    %c0_7 = arith.constant 0 : index
    %8 = vector.load %arg6[%c0_6, %c0_7] : memref<4x4xf32, #tpu.memory_space<vmem>>, vector<4x4xf32>
    tpu.vector_store %arg6[%c0_6, %c0_7], %7 {strides = array<i32>} : memref<4x4xf32, #tpu.memory_space<vmem>>, vector<4x4xf32>,
    %c0_i32_8 = arith.constant 0 : i32
    %9 = arith.cmpi eq, %arg1, %c0_i32_8 : i32
    %10 = arith.extui %9 : i1 to i32
    %c0_i32_9 = arith.constant 0 : i32
    %11 = arith.cmpi ne, %10, %c0_i32_9 : i32
    scf.if %11 {
      %c0_10 = arith.constant 0 : index
      %c0_11 = arith.constant 0 : index
      %12 = vector.load %arg6[%c0_10, %c0_11] : memref<4x4xf32, #tpu.memory_space<vmem>>, vector<4x4xf32>
      %c0_12 = arith.constant 0 : index
      %13 = memref.load %arg4[%c0_12] : memref<1xf32, #tpu.memory_space<smem>>
      %14 = vector.broadcast %13 : f32 to vector<4x4xf32>
      %15 = arith.addf %12, %14 : vector<4x4xf32>
      %c0_13 = arith.constant 0 : index
      %c0_14 = arith.constant 0 : index
      %c0_15 = arith.constant 0 : index
      %16 = vector.load %arg5[%c0_13, %c0_14, %c0_15] : memref<1x4x4xf32, #tpu.memory_space<vmem>>, vector<1x4x4xf32>
      %17 = vector.shape_cast %16 : vector<1x4x4xf32> to vector<4x4xf32>
      %18 = vector.shape_cast %15 : vector<4x4xf32> to vector<1x4x4xf32>
      tpu.vector_store %arg5[%c0_13, %c0_14, %c0_15], %18 {strides = array<i32>} : memref<1x4x4xf32, #tpu.memory_space<vmem>>, vector<1x4x4xf32>,
    } else {
    }
    return
  }
  func.func @transform_0(%arg0: i32, %arg1: i32) -> (i32, i32) {
    %c0_i32 = arith.constant 0 : i32
    return %arg0, %arg1 : i32, i32
  }
  func.func @transform_1(%arg0: i32, %arg1: i32) -> (i32, i32) {
    %c0_i32 = arith.constant 0 : i32
    %c0_i32_0 = arith.constant 0 : i32
    return %c0_i32, %arg1 : i32, i32
  }
  func.func @transform_2(%arg0: i32, %arg1: i32) -> i32 {
    %c0_i32 = arith.constant 0 : i32
    %c0_i32_0 = arith.constant 0 : i32
    return %c0_i32 : i32
  }
  func.func @transform_3(%arg0: i32, %arg1: i32) -> (i32, i32, i32) {
    %c0_i32 = arith.constant 0 : i32
    %c0_i32_0 = arith.constant 0 : i32
    %c0_i32_1 = arith.constant 0 : i32
    return %arg0, %c0_i32, %c0_i32_0 : i32, i32, i32
  }
}

</mosaic_0001>

<llo_original>
// kernel: tpu_custom_call.1
$region0: #{tpu_custom_call.1}
  #allocation0 [shape = 'u32[]', space=smem, size = 0x4, offset = 0x4, fixed_abs, tag = 'smem constant byte address 0x4 - core index']
  #allocation1 [shape = 'u32[144,128]{1,0:T(1,128)}', space=vmem, size = 0x12000, scoped, tag = 'internal scratch']
  #allocation2 [shape = 'f32[4,4]{1,0:T(4,128)}', space=vmem, size = 0x800, scoped, tag = 'scratch operand']
  #allocation3 [shape = 'f32[1]{0:T(128)S(6)}', space=smem, size = 0x200, scoped, tag = 'scoped memory for tpu_custom_call.1']
  %s0 = inlined_call_operand.hbm [shape: f32[4,128], index: 0, kind: input, shape index: {}]
  %s1 = inlined_call_operand.hbm [shape: f32[4,128], index: 1, kind: input, shape index: {}]
  %s2 = inlined_call_operand.<no memory space> [shape: f32[1], index: 2, kind: input, shape index: {}]
  %s3 = inlined_call_operand.hbm [shape: f32[1,4,4], index: 3, kind: output, shape index: {}]
  %s4 = sld [smem:[#allocation0]]
  $region38: #{tpu_custom_call.1} parent=0
    _
  %s6 = ssub.s32 1, %s4
  %s7 = scalar_select 0, %s6, %s4
  %8 = sst [smem:[#allocation3]] %s2
  $region1: #{tpu_custom_call.1} parent=0
    #allocation4 [shape = 'u8[2048]{0}', space=vmem, size = 0x800, scoped, tag = 'input window, operand 0, single buffered']
    #allocation5 [shape = 's32[1]{0}', space=sflag, size = 0x4, scoped, tag = 'scoped memory for tpu_custom_call.1']
    #allocation6 [shape = 's32[1]{0}', space=sflag, size = 0x4, scoped, tag = 'scoped memory for tpu_custom_call.1']
    #allocation7 [shape = 'u8[2048]{0}', space=vmem, size = 0x800, scoped, tag = 'input window, operand 1, single buffered']
    #allocation8 [shape = 's32[1]{0}', space=sflag, size = 0x4, scoped, tag = 'scoped memory for tpu_custom_call.1']
    #allocation9 [shape = 'u8[2048]{0}', space=vmem, size = 0x800, scoped, tag = 'output window, operand 0, single buffered']
    %9 = vsyncpa [#allocation5], 0
    %10 = vsyncpa [#allocation8], 0
    %11 = vsyncpa [#allocation6], 0
    // Predicated region
    $region2: #{tpu_custom_call.1} parent=1 // pred_check
      _
    $region3: #{tpu_custom_call.1} parent=1 // pred_check_branch
      %13 = sbr.rel (0) target = $region5
    $region4: #{tpu_custom_call.1} parent=1 // pred_region
      %s15 = ssub.s32 64, 64
      %16 = vsyncadd [#allocation5], %s15
      %s18 = sshll.u32 [#allocation4], 4
      %s19 = int_to_ptr.vmem [resolvable:$true] %s18
      %21 = dma.hbm_to_vmem [thread:$0]  %s0, 64, %s19, [#allocation5]
    $region5: #{tpu_custom_call.1} parent=1 // pred_fallthru
      _
    // Predicated region
    $region6: #{tpu_custom_call.1} parent=1 // pred_check
      _
    $region7: #{tpu_custom_call.1} parent=1 // pred_check_branch
      %23 = sbr.rel (0) target = $region9
    $region8: #{tpu_custom_call.1} parent=1 // pred_region
      %s25 = ssub.s32 64, 64
      %26 = vsyncadd [#allocation8], %s25
      %s28 = sshll.u32 [#allocation7], 4
      %s29 = int_to_ptr.vmem [resolvable:$true] %s28
      %31 = dma.hbm_to_vmem [thread:$0]  %s1, 64, %s29, [#allocation8]
    $region9: #{tpu_custom_call.1} parent=1 // pred_fallthru
      _
    // Predicated region
    $region10: #{tpu_custom_call.1} parent=1 // pred_check
      _
    $region11: #{tpu_custom_call.1} parent=1 // pred_check_branch
      %33 = sbr.rel (0) target = $region13
    $region12: #{tpu_custom_call.1} parent=1 // pred_region
      _
    $region13: #{tpu_custom_call.1} parent=1 // pred_fallthru
      _
    // Predicated region
    $region14: #{tpu_custom_call.1} parent=1 // pred_check
      _
    $region15: #{tpu_custom_call.1} parent=1 // pred_check_branch
      %35 = sbr.rel (0) target = $region17
    $region16: #{tpu_custom_call.1} parent=1 // pred_region
      %36 = dma.done [#allocation5], 64
    $region17: #{tpu_custom_call.1} parent=1 // pred_fallthru
      _
    // Predicated region
    $region18: #{tpu_custom_call.1} parent=1 // pred_check
      _
    $region19: #{tpu_custom_call.1} parent=1 // pred_check_branch
      %38 = sbr.rel (0) target = $region21
    $region20: #{tpu_custom_call.1} parent=1 // pred_region
      %39 = dma.done [#allocation8], 64
    $region21: #{tpu_custom_call.1} parent=1 // pred_fallthru
      _
    %p40 = scmp.eq.s32.totalorder 0, 0
    // Predicated region
    $region22: #{tpu_custom_call.1} parent=1 // pred_check
      %p41 = pneg %p40
    $region23: #{tpu_custom_call.1} parent=1 // pred_check_branch
      %43 = sbr.rel (%p41) target = $region25
    $region24: #{tpu_custom_call.1} parent=1 // pred_region
      %vm44 = vcmask 27648
      %45 = vst.msk [vmem:[#allocation2] sm:$0xf] %vm44, 0.0
    $region25: #{tpu_custom_call.1} parent=1 // pred_fallthru
      _
    %v46 = vld [vmem:[#allocation2] sm:$0xf]
    %v47 = vld [vmem:[#allocation7] sm:$0xf]
    %v48 = vld [vmem:[#allocation4] sm:$0xf]
    %49 = vmatprep.subr.mxu0 0.0
    %50 = vmatpush1.xpose.msra.mxu0 0.0
    %51 = vmatprep.subr.mxu0 0.0
    %52 = vmatpush1.xpose.msra.mxu0 0.0
    %53 = vmatprep.subr.mxu0 0.0
    %54 = vmatpush1.xpose.msra.mxu0 0.0
    %55 = vmatprep.subr.mxu0 0.0
    %56 = vmatpush1.xpose.msra.mxu0 0.0
    %57 = vmatprep.subr.mxu0 0.0
    %58 = vmatpush1.xpose.msra.mxu0 0.0
    %59 = vmatprep.subr.mxu0 0.0
    %60 = vmatpush1.xpose.msra.mxu0 0.0
    %61 = vmatprep.subr.mxu0 0.0
    %62 = vmatpush1.xpose.msra.mxu0 0.0
    %63 = vmatprep.subr.mxu0 0.0
    %64 = vmatpush1.xpose.msra.mxu0 0.0
    %65 = vmatprep.subr.mxu0 0.0
    %66 = vmatpush1.xpose.msra.mxu0 0.0
    %67 = vmatprep.subr.mxu0 0.0
    %68 = vmatpush1.xpose.msra.mxu0 0.0
    %69 = vmatprep.subr.mxu0 0.0
    %70 = vmatpush1.xpose.msra.mxu0 0.0
    %71 = vmatprep.subr.mxu0 0.0
    %72 = vmatpush1.xpose.msra.mxu0 0.0
    %73 = vmatprep.subr.mxu0 0.0
    %74 = vmatpush1.xpose.msra.mxu0 0.0
    %75 = vmatprep.subr.mxu0 0.0
    %76 = vmatpush1.xpose.msra.mxu0 0.0
    %77 = vmatprep.subr.mxu0 0.0
    %78 = vmatpush1.xpose.msra.mxu0 0.0
    %79 = vmatprep.subr.mxu0 0.0
    %80 = vmatpush1.xpose.msra.mxu0 %v48
    %81 = vmatprep.subr.mxu0 0.0
    %82 = vmatpush2.xpose.msra.mxu0 0.0
    %83 = vmatprep.subr.mxu0 0.0
    %84 = vmatpush2.xpose.msra.mxu0 0.0
    %85 = vmatprep.subr.mxu0 0.0
    %86 = vmatpush2.xpose.msra.mxu0 0.0
    %87 = vmatprep.subr.mxu0 0.0
    %88 = vmatpush2.xpose.msra.mxu0 0.0
    %89 = vmatprep.subr.mxu0 0.0
    %90 = vmatpush2.xpose.msra.mxu0 0.0
    %91 = vmatprep.subr.mxu0 0.0
    %92 = vmatpush2.xpose.msra.mxu0 0.0
    %93 = vmatprep.subr.mxu0 0.0
    %94 = vmatpush2.xpose.msra.mxu0 0.0
    %95 = vmatprep.subr.mxu0 0.0
    %96 = vmatpush2.xpose.msra.mxu0 0.0
    %97 = vmatprep.subr.mxu0 0.0
    %98 = vmatpush2.xpose.msra.mxu0 0.0
    %99 = vmatprep.subr.mxu0 0.0
    %100 = vmatpush2.xpose.msra.mxu0 0.0
    %101 = vmatprep.subr.mxu0 0.0
    %102 = vmatpush2.xpose.msra.mxu0 0.0
    %103 = vmatprep.subr.mxu0 0.0
    %104 = vmatpush2.xpose.msra.mxu0 0.0
    %105 = vmatprep.subr.mxu0 0.0
    %106 = vmatpush2.xpose.msra.mxu0 0.0
    %107 = vmatprep.subr.mxu0 0.0
    %108 = vmatpush2.xpose.msra.mxu0 0.0
    %109 = vmatprep.subr.mxu0 0.0
    %110 = vmatpush2.xpose.msra.mxu0 0.0
    %111 = vmatprep.subr.mxu0 0.0
    %112 = vmatpush2.xpose.msra.mxu0 0.0
    %113 = vmatprep.mubr.f32.mxu0 0.0
    %114 = vmatmul.mubr.f32.gmra.mxu0 %v47
    %v115 = vpop.f32.mrf.mxu0
    %v116 = vadd.f32 0.0, %v115
    %v117 = vpop.f32.mrf.mxu0
    %118 = vdwg.mxu0
    %v119 = vadd.f32 %v46, %v116
    %vm120 = vcmask 27648
    %121 = vst.msk [vmem:[#allocation2] sm:$0xf] %vm120, %v119
    // Predicated region
    $region26: #{tpu_custom_call.1} parent=1 // pred_check
      %p122 = pneg %p40
    $region27: #{tpu_custom_call.1} parent=1 // pred_check_branch
      %124 = sbr.rel (%p122) target = $region29
    $region28: #{tpu_custom_call.1} parent=1 // pred_region
      %v125 = vld [vmem:[#allocation2] sm:$0xf]
      %s126 = sld [smem:[#allocation3]]
      %v127 = vstv %s126
      %v128 = vadd.f32 %v125, %v127
      %129 = vst.msk [vmem:[#allocation9] sm:$0xf] %vm120, %v128
    $region29: #{tpu_custom_call.1} parent=1 // pred_fallthru
      _
    // Predicated region
    $region30: #{tpu_custom_call.1} parent=1 // pred_check
      _
    $region31: #{tpu_custom_call.1} parent=1 // pred_check_branch
      %131 = sbr.rel (0) target = $region33
    $region32: #{tpu_custom_call.1} parent=1 // pred_region
      %s133 = ssub.s32 64, 64
      %134 = vsyncadd [#allocation6], %s133
      %s136 = sshll.u32 [#allocation9], 4
      %s137 = int_to_ptr.vmem [resolvable:$true] %s136
      %139 = dma.vmem_to_hbm [thread:$0]  %s137, 64, %s3, [#allocation6]
    $region33: #{tpu_custom_call.1} parent=1 // pred_fallthru
      _
    // Predicated region
    $region34: #{tpu_custom_call.1} parent=1 // pred_check
      _
    $region35: #{tpu_custom_call.1} parent=1 // pred_check_branch
      %141 = sbr.rel (0) target = $region37
    $region36: #{tpu_custom_call.1} parent=1 // pred_region
      %142 = dma.done [#allocation6], 64
    $region37: #{tpu_custom_call.1} parent=1 // pred_fallthru
      _
    %143 = vsyncpa [#allocation5], 1
    %144 = vsyncpa [#allocation8], 1
    %145 = vsyncpa [#allocation6], 1

</llo_original>
